<compile_context>
chip_gen: v5e
topology: v5e:2x2
jax: 0.10.0
libtpu: 0.0.40
codegen_flags: <defaults>
</compile_context>

<pallas_src>
import math
import jax
import jax.numpy as jnp
from jax.experimental import pallas as pl
from jax.experimental.pallas import tpu as pltpu


def _round_up(x, m):
    return ((x + m - 1) // m) * m


def lora_linear_kernel(x_ref, wt_ref, xa_ref, lb_ref, bias_ref, o_ref):
    """One (i, j) output tile; K is the innermost ("arbitrary") grid axis.

    o_ref (f32) is resident across k and serves directly as the accumulator:
      k == 0 : o = (x@A) @ lora_B + bias      (LoRA stage 2 + bias, once/tile)
      every k: o += x @ W^T  (bf16 MXU, f32 accumulation)
    """
    k = pl.program_id(2)

    @pl.when(k == 0)
    def _():
        o_ref[...] = (
            jnp.dot(xa_ref[...], lb_ref[...], preferred_element_type=jnp.float32)
            + bias_ref[...]
        )

    o_ref[...] += jnp.dot(x_ref[...], wt_ref[...],
                          preferred_element_type=jnp.float32)


def prepare_lora_weights(w, bias, lora_a, lora_b, *, tn=1024, tk=512,
                         compute_dtype=jnp.bfloat16):
    """One-time weight prep: transpose, pad to tile multiples, cast to bf16.

    Call once at model init / weight load and reuse the result for every
    forward call; only the activation `x` is padded per call.
    """
    out_f, in_f = w.shape
    r = lora_a.shape[1]

    # Shrink tiles for small layers, keep lane (128) alignment.
    tn = min(tn, _round_up(out_f, 128))
    tk = min(tk, _round_up(in_f, 128))
    Np = _round_up(out_f, tn)
    Kp = _round_up(in_f, tk)
    rp = 128                     # rank padded to a full lane group

    wt = jnp.pad(w.T, ((0, Kp - in_f), (0, Np - out_f))).astype(compute_dtype)
    bp = jnp.pad(bias, (0, Np - out_f)).reshape(1, Np).astype(jnp.float32)
    a_cd = lora_a.astype(compute_dtype)                    # used for x@A precompute
    lbp = jnp.pad(lora_b, ((0, rp - r), (0, Np - out_f))).astype(compute_dtype)

    return dict(wt=wt, bias=bp, lora_a=a_cd, lora_b=lbp,
                out_features=out_f, in_features=in_f, r=r,
                tn=tn, tk=tk, Np=Np, Kp=Kp, rp=rp,
                compute_dtype=compute_dtype)


def lora_linear_prepared(x, prep, *, tm=512):
    """x: (M, in_features) -> (M, out_features), f32."""
    M, in_f = x.shape
    assert in_f == prep["in_features"]
    cd = prep["compute_dtype"]
    tn, tk = prep["tn"], prep["tk"]
    Np, Kp, rp = prep["Np"], prep["Kp"], prep["rp"]
    out_f, r = prep["out_features"], prep["r"]

    # bf16 tiles pack [16, 128] per vreg -> keep tm a multiple of 16.
    tm = min(tm, _round_up(M, 16))
    Mp = _round_up(M, tm)

    x_cd = x.astype(cd)
    # LoRA stage 1 (tiny skinny matmul) precomputed once per call, not per N tile.
    xa = jnp.dot(x_cd, prep["lora_a"], preferred_element_type=jnp.float32)  # (M, r)
    xa_p = jnp.pad(xa, ((0, Mp - M), (0, rp - r))).astype(cd)               # (Mp, 128)
    xp = jnp.pad(x_cd, ((0, Mp - M), (0, Kp - in_f)))                       # (Mp, Kp)

    grid = (Mp // tm, Np // tn, Kp // tk)

    out_p = pl.pallas_call(
        lora_linear_kernel,
        out_shape=jax.ShapeDtypeStruct((Mp, Np), jnp.float32),
        grid_spec=pltpu.PrefetchScalarGridSpec(
            num_scalar_prefetch=0,
            grid=grid,
            in_specs=[
                pl.BlockSpec((tm, tk), lambda i, j, k: (i, k)),   # x      (bf16)
                pl.BlockSpec((tk, tn), lambda i, j, k: (k, j)),   # W^T    (bf16)
                pl.BlockSpec((tm, rp), lambda i, j, k: (i, 0)),   # x@A    (resident in j,k)
                pl.BlockSpec((rp, tn), lambda i, j, k: (0, j)),   # lora_B (resident in i,k)
                pl.BlockSpec((1, tn), lambda i, j, k: (0, j)),    # bias   (f32)
            ],
            out_specs=pl.BlockSpec((tm, tn), lambda i, j, k: (i, j)),
        ),
        compiler_params=pltpu.CompilerParams(
            dimension_semantics=("parallel", "parallel", "arbitrary"),
            vmem_limit_bytes=48 * 1024 * 1024,   # < v7x's 64 MiB physical VMEM
        ),
    )(xp, prep["wt"], xa_p, prep["lora_b"], prep["bias"])

    return out_p[:M, :out_f]


def lora_linear(x, w, bias, lora_a, lora_b, *, tm=512, tn=1024, tk=512):
    """Convenience one-shot wrapper (prepares weights + applies)."""
    prep = prepare_lora_weights(w, bias, lora_a, lora_b, tn=tn, tk=tk)
    return lora_linear_prepared(x, prep, tm=tm)


def reference(x, w, bias, lora_a, lora_b):
    return x @ w.T + bias + (x @ lora_a) @ lora_b


def _check(x, w, bias, lora_a, lora_b, **tiles):
    out = jax.block_until_ready(lora_linear(x, w, bias, lora_a, lora_b, **tiles))
    ref = reference(x, w, bias, lora_a, lora_b)
    assert out.shape == ref.shape
    err = jnp.max(jnp.abs(out - ref))
    # bf16 MXU inputs with f32 accumulation -> loosened tolerance vs f32 reference.
    assert jnp.allclose(out, ref, atol=3e-2, rtol=3e-2), f"max err {err}"


if __name__ == "__main__":
    key = jax.random.PRNGKey(0)
    k_x, k_a, k_b2, k_w, k_b = jax.random.split(key, 5)

    # ---- Test 1: small shapes consistent with the module ------------------
    M, in_features, out_features, r = 8, 32, 64, 4

    x = jax.random.normal(k_x, (M, in_features), dtype=jnp.float32)

    # Init matching LoraLinear.__init__:
    #   lora_A ~ U(-1/sqrt(r), 1/sqrt(r)); lora_B = zeros at init (LoRA path is
    #   numerically a no-op then) -- use nonzero lora_B here to exercise the path.
    stdv_a = 1.0 / math.sqrt(r)
    lora_a = jax.random.uniform(k_a, (in_features, r), jnp.float32,
                                minval=-stdv_a, maxval=stdv_a)
    lora_b = 0.05 * jax.random.normal(k_b2, (r, out_features), dtype=jnp.float32)

    stdv_w = 1.0 / math.sqrt(in_features)
    w = jax.random.uniform(k_w, (out_features, in_features), jnp.float32,
                           minval=-stdv_w, maxval=stdv_w)
    bias = jax.random.uniform(k_b, (out_features,), jnp.float32,
                              minval=-stdv_w, maxval=stdv_w)

    _check(x, w, bias, lora_a, lora_b)

    # Demonstrate the hoisted weight prep: prepare once, apply twice.
    prep = prepare_lora_weights(w, bias, lora_a, lora_b)
    o1 = jax.block_until_ready(lora_linear_prepared(x, prep))
    o2 = jax.block_until_ready(lora_linear_prepared(x * 0.5, prep))
    assert o1.shape == (M, out_features) and o2.shape == (M, out_features)

    # ---- Test 2: exercise the multi-step (M, N, K) grid + k==0 seeding -----
    M2, in2, out2, r2 = 128, 256, 256, 4
    k_x2, k_a2, k_b22, k_w2, k_bb = jax.random.split(jax.random.PRNGKey(1), 5)
    x2 = jax.random.normal(k_x2, (M2, in2), dtype=jnp.float32)
    a2 = jax.random.uniform(k_a2, (in2, r2), jnp.float32, minval=-0.5, maxval=0.5)
    b2 = 0.05 * jax.random.normal(k_b22, (r2, out2), dtype=jnp.float32)
    w2 = jax.random.uniform(k_w2, (out2, in2), jnp.float32,
                            minval=-1.0 / math.sqrt(in2), maxval=1.0 / math.sqrt(in2))
    bias2 = jax.random.uniform(k_bb, (out2,), jnp.float32, minval=-0.1, maxval=0.1)

    _check(x2, w2, bias2, a2, b2, tm=64, tn=128, tk=128)   # grid = (2, 2, 2)

    print("KERNEL_OK")
</pallas_src>

<mosaic_0001>
module attributes {stable_mosaic.version = 11 : i64} {
  func.func @lora_linear_kernel(%arg0: i32, %arg1: i32, %arg2: i32, %arg3: memref<16x128xbf16, #tpu.memory_space<vmem>>, %arg4: memref<128x128xbf16, #tpu.memory_space<vmem>>, %arg5: memref<16x128xbf16, #tpu.memory_space<vmem>>, %arg6: memref<128x128xbf16, #tpu.memory_space<vmem>>, %arg7: memref<1x128xf32, #tpu.memory_space<vmem>>, %arg8: memref<16x128xf32, #tpu.memory_space<vmem>>) attributes {dimension_semantics = [#tpu.dimension_semantics<parallel>, #tpu.dimension_semantics<parallel>, #tpu.dimension_semantics<arbitrary>], iteration_bounds = array<i64: 1, 1, 1>, scalar_prefetch = 0 : i64, scratch_operands = 0 : i64, tpu.core_type = #tpu.core_type<tc>, window_params = [{transform_indices = @transform_0, window_bounds = array<i64: 16, 128>}, {transform_indices = @transform_1, window_bounds = array<i64: 128, 128>}, {transform_indices = @transform_2, window_bounds = array<i64: 16, 128>}, {transform_indices = @transform_3, window_bounds = array<i64: 128, 128>}, {transform_indices = @transform_4, window_bounds = array<i64: 1, 128>}, {transform_indices = @transform_5, window_bounds = array<i64: 16, 128>}]} {
    %c0_i32 = arith.constant 0 : i32
    %0 = arith.cmpi eq, %arg2, %c0_i32 : i32
    %1 = arith.extui %0 : i1 to i32
    %c0_i32_0 = arith.constant 0 : i32
    %2 = arith.cmpi ne, %1, %c0_i32_0 : i32
    scf.if %2 {
      %c0_8 = arith.constant 0 : index
      %c0_9 = arith.constant 0 : index
      %9 = vector.load %arg5[%c0_8, %c0_9] : memref<16x128xbf16, #tpu.memory_space<vmem>>, vector<16x128xbf16>
      %c0_10 = arith.constant 0 : index
      %c0_11 = arith.constant 0 : index
      %10 = vector.load %arg6[%c0_10, %c0_11] : memref<128x128xbf16, #tpu.memory_space<vmem>>, vector<128x128xbf16>
      %cst_12 = arith.constant dense<0.000000e+00> : vector<16x128xf32>
      %11 = tpu.matmul %9, %10, %cst_12 {dimension_numbers = #tpu.dot_dimension_numbers<[1], [0], [0], [1], [0, 0, 1, 1], [], []>} : vector<16x128xbf16>, vector<128x128xbf16>, vector<16x128xf32> -> vector<16x128xf32>
      %c0_13 = arith.constant 0 : index
      %c0_14 = arith.constant 0 : index
      %12 = vector.load %arg7[%c0_13, %c0_14] : memref<1x128xf32, #tpu.memory_space<vmem>>, vector<1x128xf32>
      %13 = vector.broadcast %12 : vector<1x128xf32> to vector<16x128xf32>
      %14 = arith.addf %11, %13 : vector<16x128xf32>
      %c0_15 = arith.constant 0 : index
      %c0_16 = arith.constant 0 : index
      %15 = vector.load %arg8[%c0_15, %c0_16] : memref<16x128xf32, #tpu.memory_space<vmem>>, vector<16x128xf32>
      tpu.vector_store %arg8[%c0_15, %c0_16], %14 {strides = array<i32>} : memref<16x128xf32, #tpu.memory_space<vmem>>, vector<16x128xf32>,
    } else {
    }
    %c0 = arith.constant 0 : index
    %c0_1 = arith.constant 0 : index
    %3 = vector.load %arg8[%c0, %c0_1] : memref<16x128xf32, #tpu.memory_space<vmem>>, vector<16x128xf32>
    %c0_2 = arith.constant 0 : index
    %c0_3 = arith.constant 0 : index
    %4 = vector.load %arg3[%c0_2, %c0_3] : memref<16x128xbf16, #tpu.memory_space<vmem>>, vector<16x128xbf16>
    %c0_4 = arith.constant 0 : index
    %c0_5 = arith.constant 0 : index
    %5 = vector.load %arg4[%c0_4, %c0_5] : memref<128x128xbf16, #tpu.memory_space<vmem>>, vector<128x128xbf16>
    %cst = arith.constant dense<0.000000e+00> : vector<16x128xf32>
    %6 = tpu.matmul %4, %5, %cst {dimension_numbers = #tpu.dot_dimension_numbers<[1], [0], [0], [1], [0, 0, 1, 1], [], []>} : vector<16x128xbf16>, vector<128x128xbf16>, vector<16x128xf32> -> vector<16x128xf32>
    %7 = arith.addf %3, %6 : vector<16x128xf32>
    %c0_6 = arith.constant 0 : index
    %c0_7 = arith.constant 0 : index
    %8 = vector.load %arg8[%c0_6, %c0_7] : memref<16x128xf32, #tpu.memory_space<vmem>>, vector<16x128xf32>
    tpu.vector_store %arg8[%c0_6, %c0_7], %7 {strides = array<i32>} : memref<16x128xf32, #tpu.memory_space<vmem>>, vector<16x128xf32>,
    return
  }
  func.func @transform_0(%arg0: i32, %arg1: i32, %arg2: i32) -> (i32, i32) {
    %c0_i32 = arith.constant 0 : i32
    return %arg0, %arg2 : i32, i32
  }
  func.func @transform_1(%arg0: i32, %arg1: i32, %arg2: i32) -> (i32, i32) {
    %c0_i32 = arith.constant 0 : i32
    return %arg2, %arg1 : i32, i32
  }
  func.func @transform_2(%arg0: i32, %arg1: i32, %arg2: i32) -> (i32, i32) {
    %c0_i32 = arith.constant 0 : i32
    %c0_i32_0 = arith.constant 0 : i32
    return %arg0, %c0_i32 : i32, i32
  }
  func.func @transform_3(%arg0: i32, %arg1: i32, %arg2: i32) -> (i32, i32) {
    %c0_i32 = arith.constant 0 : i32
    %c0_i32_0 = arith.constant 0 : i32
    return %c0_i32, %arg1 : i32, i32
  }
  func.func @transform_4(%arg0: i32, %arg1: i32, %arg2: i32) -> (i32, i32) {
    %c0_i32 = arith.constant 0 : i32
    %c0_i32_0 = arith.constant 0 : i32
    return %c0_i32, %arg1 : i32, i32
  }
  func.func @transform_5(%arg0: i32, %arg1: i32, %arg2: i32) -> (i32, i32) {
    %c0_i32 = arith.constant 0 : i32
    return %arg0, %arg1 : i32, i32
  }
}

</mosaic_0001>

<llo_original>
// kernel: tpu_custom_call.1
$region0: #{tpu_custom_call.1}
  #allocation0 [shape = 'u32[]', space=smem, size = 0x4, offset = 0x4, fixed_abs, tag = 'smem constant byte address 0x4 - core index']
  #allocation1 [shape = 'u32[72,128]{1,0:T(1,128)}', space=vmem, size = 0x9000, scoped, tag = 'internal scratch']
  %s0 = inlined_call_operand.hbm [shape: bf16[16,128], index: 0, kind: input, shape index: {}]
  %s1 = inlined_call_operand.hbm [shape: bf16[128,128], index: 1, kind: input, shape index: {}]
  %s2 = inlined_call_operand.hbm [shape: bf16[16,128], index: 2, kind: input, shape index: {}]
  %s3 = inlined_call_operand.hbm [shape: bf16[128,128], index: 3, kind: input, shape index: {}]
  %s4 = inlined_call_operand.vmem [shape: f32[1,128], index: 4, kind: input, shape index: {}]
  %s5 = inlined_call_operand.hbm [shape: f32[16,128], index: 5, kind: output, shape index: {}]
  %s6 = sld [smem:[#allocation0]]
  $region50: #{tpu_custom_call.1} parent=0
    _
  %s8 = ssub.s32 1, %s6
  %s9 = scalar_select 0, %s8, %s6
  $region1: #{tpu_custom_call.1} parent=0
    #allocation2 [shape = 'u8[4096]{0}', space=vmem, size = 0x1000, scoped, tag = 'input window, operand 0, single buffered']
    #allocation3 [shape = 's32[1]{0}', space=sflag, size = 0x4, scoped, tag = 'scoped memory for tpu_custom_call.1']
    #allocation4 [shape = 's32[1]{0}', space=sflag, size = 0x4, scoped, tag = 'scoped memory for tpu_custom_call.1']
    #allocation5 [shape = 'u8[32768]{0}', space=vmem, size = 0x8000, scoped, tag = 'input window, operand 1, single buffered']
    #allocation6 [shape = 's32[1]{0}', space=sflag, size = 0x4, scoped, tag = 'scoped memory for tpu_custom_call.1']
    #allocation7 [shape = 'u8[4096]{0}', space=vmem, size = 0x1000, scoped, tag = 'input window, operand 2, single buffered']
    #allocation8 [shape = 'u8[32768]{0}', space=vmem, size = 0x8000, scoped, tag = 'input window, operand 3, single buffered']
    #allocation9 [shape = 's32[1]{0}', space=sflag, size = 0x4, scoped, tag = 'scoped memory for tpu_custom_call.1']
    #allocation10 [shape = 'u8[8192]{0}', space=vmem, size = 0x2000, scoped, tag = 'output window, operand 0, single buffered']
    %10 = vsyncpa [#allocation3], 0
    %11 = vsyncpa [#allocation6], 0
    %12 = vsyncpa [#allocation9], 0
    %13 = vsyncpa [#allocation4], 0
    // Predicated region
    $region2: #{tpu_custom_call.1} parent=1 // pred_check
      _
    $region3: #{tpu_custom_call.1} parent=1 // pred_check_branch
      %15 = sbr.rel (0) target = $region5
    $region4: #{tpu_custom_call.1} parent=1 // pred_region
      %17 = vsyncadd [#allocation3], 0
      %s18 = sshll.u32 %s0, 4
      %s19 = int_to_ptr.hbm [resolvable:$true] %s18
      %s20 = sshll.u32 [#allocation2], 4
      %s21 = int_to_ptr.vmem [resolvable:$true] %s20
      %26 = dma.hbm_to_vmem [thread:$0]  %s19, 128, %s21, [#allocation3], 64, 64, 4
    $region5: #{tpu_custom_call.1} parent=1 // pred_fallthru
      _
    // Predicated region
    $region6: #{tpu_custom_call.1} parent=1 // pred_check
      _
    $region7: #{tpu_custom_call.1} parent=1 // pred_check_branch
      %28 = sbr.rel (0) target = $region9
    $region8: #{tpu_custom_call.1} parent=1 // pred_region
      %30 = vsyncadd [#allocation6], 0
      %s31 = sshll.u32 %s1, 4
      %s32 = int_to_ptr.hbm [resolvable:$true] %s31
      %s33 = sshll.u32 [#allocation5], 4
      %s34 = int_to_ptr.vmem [resolvable:$true] %s33
      %39 = dma.hbm_to_vmem [thread:$0]  %s32, 1024, %s34, [#allocation6], 64, 64, 4
    $region9: #{tpu_custom_call.1} parent=1 // pred_fallthru
      _
    // Predicated region
    $region10: #{tpu_custom_call.1} parent=1 // pred_check
      _
    $region11: #{tpu_custom_call.1} parent=1 // pred_check_branch
      %41 = sbr.rel (0) target = $region13
    $region12: #{tpu_custom_call.1} parent=1 // pred_region
      %43 = vsyncadd [#allocation6], 0
      %s44 = sshll.u32 %s2, 4
      %s45 = int_to_ptr.hbm [resolvable:$true] %s44
      %s46 = sshll.u32 [#allocation7], 4
      %s47 = int_to_ptr.vmem [resolvable:$true] %s46
      %52 = dma.hbm_to_vmem [thread:$0]  %s45, 128, %s47, [#allocation6], 64, 64, 4
    $region13: #{tpu_custom_call.1} parent=1 // pred_fallthru
      _
    // Predicated region
    $region14: #{tpu_custom_call.1} parent=1 // pred_check
      _
    $region15: #{tpu_custom_call.1} parent=1 // pred_check_branch
      %54 = sbr.rel (0) target = $region17
    $region16: #{tpu_custom_call.1} parent=1 // pred_region
      %56 = vsyncadd [#allocation9], 0
      %s57 = sshll.u32 %s3, 4
      %s58 = int_to_ptr.hbm [resolvable:$true] %s57
      %s59 = sshll.u32 [#allocation8], 4
      %s60 = int_to_ptr.vmem [resolvable:$true] %s59
      %65 = dma.hbm_to_vmem [thread:$0]  %s58, 1024, %s60, [#allocation9], 64, 64, 4
    $region17: #{tpu_custom_call.1} parent=1 // pred_fallthru
      _
    // Predicated region
    $region18: #{tpu_custom_call.1} parent=1 // pred_check
      _
    $region19: #{tpu_custom_call.1} parent=1 // pred_check_branch
      %67 = sbr.rel (0) target = $region21
    $region20: #{tpu_custom_call.1} parent=1 // pred_region
      _
    $region21: #{tpu_custom_call.1} parent=1 // pred_fallthru
      _
    // Predicated region
    $region22: #{tpu_custom_call.1} parent=1 // pred_check
      _
    $region23: #{tpu_custom_call.1} parent=1 // pred_check_branch
      %69 = sbr.rel (0) target = $region25
    $region24: #{tpu_custom_call.1} parent=1 // pred_region
      %71 = dma.done [#allocation3], 128
    $region25: #{tpu_custom_call.1} parent=1 // pred_fallthru
      _
    // Predicated region
    $region26: #{tpu_custom_call.1} parent=1 // pred_check
      _
    $region27: #{tpu_custom_call.1} parent=1 // pred_check_branch
      %73 = sbr.rel (0) target = $region29
    $region28: #{tpu_custom_call.1} parent=1 // pred_region
      %75 = dma.done [#allocation6], 1024
    $region29: #{tpu_custom_call.1} parent=1 // pred_fallthru
      _
    // Predicated region
    $region30: #{tpu_custom_call.1} parent=1 // pred_check
      _
    $region31: #{tpu_custom_call.1} parent=1 // pred_check_branch
      %77 = sbr.rel (0) target = $region33
    $region32: #{tpu_custom_call.1} parent=1 // pred_region
      %79 = dma.done [#allocation6], 128
    $region33: #{tpu_custom_call.1} parent=1 // pred_fallthru
      _
    // Predicated region
    $region34: #{tpu_custom_call.1} parent=1 // pred_check
      _
    $region35: #{tpu_custom_call.1} parent=1 // pred_check_branch
      %81 = sbr.rel (0) target = $region37
    $region36: #{tpu_custom_call.1} parent=1 // pred_region
      %83 = dma.done [#allocation9], 1024
    $region37: #{tpu_custom_call.1} parent=1 // pred_fallthru
      _
    %p84 = scmp.eq.s32.totalorder 0, 0
    // Predicated region
    $region38: #{tpu_custom_call.1} parent=1 // pred_check
      %p85 = pneg %p84
    $region39: #{tpu_custom_call.1} parent=1 // pred_check_branch
      %87 = sbr.rel (%p85) target = $region41
    $region40: #{tpu_custom_call.1} parent=1 // pred_region
      %v88 = vld [vmem:[#allocation7] sm:$0xf]
      %v89 = vld [vmem:[#allocation7 + $0x4] sm:$0xf]
      %v90 = vld [vmem:[#allocation8] sm:$0xf]
      %v91 = vld [vmem:[#allocation8 + $0x4] sm:$0xf]
      %v92 = vld [vmem:[#allocation8 + $0x8] sm:$0xf]
      %v93 = vld [vmem:[#allocation8 + $0xc] sm:$0xf]
      %v94 = vld [vmem:[#allocation8 + $0x10] sm:$0xf]
      %v95 = vld [vmem:[#allocation8 + $0x14] sm:$0xf]
      %v96 = vld [vmem:[#allocation8 + $0x18] sm:$0xf]
      %v97 = vld [vmem:[#allocation8 + $0x1c] sm:$0xf]
      %v98 = vld [vmem:[#allocation8 + $0x20] sm:$0xf]
      %v99 = vld [vmem:[#allocation8 + $0x24] sm:$0xf]
      %v100 = vld [vmem:[#allocation8 + $0x28] sm:$0xf]
      %v101 = vld [vmem:[#allocation8 + $0x2c] sm:$0xf]
      %v102 = vld [vmem:[#allocation8 + $0x30] sm:$0xf]
      %v103 = vld [vmem:[#allocation8 + $0x34] sm:$0xf]
      %v104 = vld [vmem:[#allocation8 + $0x38] sm:$0xf]
      %v105 = vld [vmem:[#allocation8 + $0x3c] sm:$0xf]
      %v106 = vld [vmem:[%s4] sm:$0x1]
      %v108 = vperm.slane %v106, 0
      %v112 = vunpack.c.l.b16 %v88
      %v113 = vunpack.c.l.b16 %v89
      %v114 = vpack.c.b16 %v113, %v112
      %v132 = vunpack.c.l.b16 %v90
      %v133 = vunpack.c.l.b16 %v91
      %v134 = vunpack.c.l.b16 %v92
      %v135 = vunpack.c.l.b16 %v93
      %v136 = vunpack.c.l.b16 %v94
      %v137 = vunpack.c.l.b16 %v95
      %v138 = vunpack.c.l.b16 %v96
      %v139 = vunpack.c.l.b16 %v97
      %v140 = vunpack.c.l.b16 %v98
      %v141 = vunpack.c.l.b16 %v99
      %v142 = vunpack.c.l.b16 %v100
      %v143 = vunpack.c.l.b16 %v101
      %v144 = vunpack.c.l.b16 %v102
      %v145 = vunpack.c.l.b16 %v103
      %v146 = vunpack.c.l.b16 %v104
      %v147 = vunpack.c.l.b16 %v105
      %v148 = vpack.c.b16 %v133, %v132
      %v149 = vpack.c.b16 %v135, %v134
      %v150 = vpack.c.b16 %v137, %v136
      %v151 = vpack.c.b16 %v139, %v138
      %v152 = vpack.c.b16 %v141, %v140
      %v153 = vpack.c.b16 %v143, %v142
      %v154 = vpack.c.b16 %v145, %v144
      %v155 = vpack.c.b16 %v147, %v146
      %164 = vmatpush.bf16.msra.mxu0 %v155
      %165 = vmatpush.bf16.msra.mxu0 %v154
      %166 = vmatpush.bf16.msra.mxu0 %v153
      %167 = vmatpush.bf16.msra.mxu0 %v152
      %168 = vmatpush.bf16.msra.mxu0 %v151
      %169 = vmatpush.bf16.msra.mxu0 %v150
      %170 = vmatpush.bf16.msra.mxu0 %v149
      %171 = vmatpush.bf16.msra.mxu0 %v148
      %172 = vmatmul.bf16.gmra.mxu0 %v114
      %v173 = vpop.f32.mrf.mxu0
      %v174 = vadd.f32 %v108, %v173
      %v175 = vpop.f32.mrf.mxu0
      %v176 = vadd.f32 %v108, %v175
      %177 = vdwg.mxu0
      %178 = vst [vmem:[#allocation10] sm:$0xff] %v174
      %179 = vst [vmem:[#allocation10 + $0x8] sm:$0xff] %v176
    $region41: #{tpu_custom_call.1} parent=1 // pred_fallthru
      _
    %v180 = vld [vmem:[#allocation10] sm:$0xff]
    %v181 = vld [vmem:[#allocation10 + $0x8] sm:$0xff]
    %v182 = vld [vmem:[#allocation2] sm:$0xf]
    %v183 = vld [vmem:[#allocation2 + $0x4] sm:$0xf]
    %v184 = vld [vmem:[#allocation5] sm:$0xf]
    %v185 = vld [vmem:[#allocation5 + $0x4] sm:$0xf]
    %v186 = vld [vmem:[#allocation5 + $0x8] sm:$0xf]
    %v187 = vld [vmem:[#allocation5 + $0xc] sm:$0xf]
    %v188 = vld [vmem:[#allocation5 + $0x10] sm:$0xf]
    %v189 = vld [vmem:[#allocation5 + $0x14] sm:$0xf]
    %v190 = vld [vmem:[#allocation5 + $0x18] sm:$0xf]
    %v191 = vld [vmem:[#allocation5 + $0x1c] sm:$0xf]
    %v192 = vld [vmem:[#allocation5 + $0x20] sm:$0xf]
    %v193 = vld [vmem:[#allocation5 + $0x24] sm:$0xf]
    %v194 = vld [vmem:[#allocation5 + $0x28] sm:$0xf]
    %v195 = vld [vmem:[#allocation5 + $0x2c] sm:$0xf]
    %v196 = vld [vmem:[#allocation5 + $0x30] sm:$0xf]
    %v197 = vld [vmem:[#allocation5 + $0x34] sm:$0xf]
    %v198 = vld [vmem:[#allocation5 + $0x38] sm:$0xf]
    %v199 = vld [vmem:[#allocation5 + $0x3c] sm:$0xf]
    %v202 = vunpack.c.l.b16 %v182
    %v203 = vunpack.c.l.b16 %v183
    %v204 = vpack.c.b16 %v203, %v202
    %v222 = vunpack.c.l.b16 %v184
    %v223 = vunpack.c.l.b16 %v185
    %v224 = vunpack.c.l.b16 %v186
    %v225 = vunpack.c.l.b16 %v187
    %v226 = vunpack.c.l.b16 %v188
    %v227 = vunpack.c.l.b16 %v189
    %v228 = vunpack.c.l.b16 %v190
    %v229 = vunpack.c.l.b16 %v191
    %v230 = vunpack.c.l.b16 %v192
    %v231 = vunpack.c.l.b16 %v193
    %v232 = vunpack.c.l.b16 %v194
    %v233 = vunpack.c.l.b16 %v195
    %v234 = vunpack.c.l.b16 %v196
    %v235 = vunpack.c.l.b16 %v197
    %v236 = vunpack.c.l.b16 %v198
    %v237 = vunpack.c.l.b16 %v199
    %v238 = vpack.c.b16 %v223, %v222
    %v239 = vpack.c.b16 %v225, %v224
    %v240 = vpack.c.b16 %v227, %v226
    %v241 = vpack.c.b16 %v229, %v228
    %v242 = vpack.c.b16 %v231, %v230
    %v243 = vpack.c.b16 %v233, %v232
    %v244 = vpack.c.b16 %v235, %v234
    %v245 = vpack.c.b16 %v237, %v236
    %254 = vmatpush.bf16.msra.mxu0 %v245
    %255 = vmatpush.bf16.msra.mxu0 %v244
    %256 = vmatpush.bf16.msra.mxu0 %v243
    %257 = vmatpush.bf16.msra.mxu0 %v242
    %258 = vmatpush.bf16.msra.mxu0 %v241
    %259 = vmatpush.bf16.msra.mxu0 %v240
    %260 = vmatpush.bf16.msra.mxu0 %v239
    %261 = vmatpush.bf16.msra.mxu0 %v238
    %262 = vmatmul.bf16.gmra.mxu0 %v204
    %v263 = vpop.f32.mrf.mxu0
    %v264 = vadd.f32 0.0, %v263
    %v265 = vpop.f32.mrf.mxu0
    %v266 = vadd.f32 0.0, %v265
    %267 = vdwg.mxu0
    %v268 = vadd.f32 %v180, %v264
    %v269 = vadd.f32 %v181, %v266
    %270 = vst [vmem:[#allocation10] sm:$0xff] %v268
    %271 = vst [vmem:[#allocation10 + $0x8] sm:$0xff] %v269
    // Predicated region
    $region42: #{tpu_custom_call.1} parent=1 // pred_check
      _
    $region43: #{tpu_custom_call.1} parent=1 // pred_check_branch
      %273 = sbr.rel (0) target = $region45
    $region44: #{tpu_custom_call.1} parent=1 // pred_region
      %275 = vsyncadd [#allocation4], 0
      %s276 = sshll.u32 [#allocation10], 4
      %s277 = int_to_ptr.vmem [resolvable:$true] %s276
      %s278 = sshll.u32 %s5, 4
      %s279 = int_to_ptr.hbm [resolvable:$true] %s278
      %284 = dma.vmem_to_hbm [thread:$0]  %s277, 256, %s279, [#allocation4], 128, 128, 8
    $region45: #{tpu_custom_call.1} parent=1 // pred_fallthru
      _
    // Predicated region
    $region46: #{tpu_custom_call.1} parent=1 // pred_check
      _
    $region47: #{tpu_custom_call.1} parent=1 // pred_check_branch
      %286 = sbr.rel (0) target = $region49
    $region48: #{tpu_custom_call.1} parent=1 // pred_region
      %288 = dma.done [#allocation4], 256
    $region49: #{tpu_custom_call.1} parent=1 // pred_fallthru
      _
    %289 = vsyncpa [#allocation3], 1
    %290 = vsyncpa [#allocation6], 1
    %291 = vsyncpa [#allocation9], 1
    %292 = vsyncpa [#allocation4], 1

</llo_original>
